<compile_context>
chip_gen: v6e
topology: v6e:2x2x1
jax: 0.10.0
libtpu: 0.0.40
codegen_flags: <defaults>
</compile_context>

<pallas_src>
import jax
import jax.numpy as jnp
from jax.experimental import pallas as pl
from jax.experimental.pallas import tpu as pltpu


# ----------------------------- Pallas kernel -------------------------------

def _roto_conv_kernel(x_ref, w_ref, b_ref, o_ref):
    """One fused matmul (conv with 4 flip variants in the columns) + 4-way max.

    x_ref: (Mt, Kp)        im2col rows for Bt images (Mt = Bt*H), bf16
    w_ref: (Kp, 4*W*Cout)  banded weights: kh+kw shifts + Cin contraction +
                           the 4 kernel-flip variants folded into columns,
                           column order (variant, w, cout), bf16
    b_ref: (1, W*Cout)     bias tiled over w, f32
    o_ref: (Mt, W*Cout)    max-over-variants conv output (lane-dense), f32
    """
    WC = o_ref.shape[1]                       # W * Cout (== 128 here)

    # Single MXU contraction: K = 3*Wp*Cin padded to 256, N = 4*W*Cout = 512.
    acc = jnp.dot(x_ref[...], w_ref[...], preferred_element_type=jnp.float32)

    # Fused equi_flatten: max over the 4 flip variants (contiguous, 128-lane
    # aligned column chunks), then bias (identical per variant). VPU work
    # rides under the matmul.
    m = jnp.maximum(jnp.maximum(acc[:, 0 * WC:1 * WC], acc[:, 1 * WC:2 * WC]),
                    jnp.maximum(acc[:, 2 * WC:3 * WC], acc[:, 3 * WC:4 * WC]))
    o_ref[...] = (m + b_ref[...]).astype(o_ref.dtype)


# ------------------------------- JAX glue ----------------------------------

def _banded_flip_weights(w_hwio, W):
    """(K,K,Cin,Cout) HWIO weights -> (K, (W+K-1)*Cin, 4*W*Cout) banded matrix.

    Column order is (variant, w, cout).  Variant v uses the kernel flipped
    along kh/kw so that unflip_v(conv(flip_v(x))) == conv(x, flipped kernel);
    valid because padding is symmetric and stride == 1.
    """
    K, _, Cin, Cout = w_hwio.shape
    # torch flip order ((), (-1,), (-2,-1), (-2,)) on the input maps to
    # (identity, flip kw, flip kh+kw, flip kh) on the weights.
    wf = jnp.stack([w_hwio,
                    w_hwio[:, ::-1],
                    w_hwio[::-1, ::-1],
                    w_hwio[::-1, :]], axis=3)             # (K, K, Cin, 4, Cout)
    # Toeplitz band selector: S[kw, wp, w] = 1 iff wp == w + kw
    Wp = W + K - 1
    wp = jnp.arange(Wp)[None, :, None]
    wo = jnp.arange(W)[None, None, :]
    kw = jnp.arange(K)[:, None, None]
    S = (wp == wo + kw).astype(w_hwio.dtype)              # (K, Wp, W)
    big = jnp.einsum("kpw,hkcvo->hpcvwo", S, wf)          # (K, Wp, Cin, 4, W, Cout)
    return big.reshape(K, Wp * Cin, 4 * W * Cout)


def make_roto_conv(w_hwio, b, *, H, W, compute_dtype=jnp.bfloat16):
    """Build a roto_conv forward with weights prepared once (module-init style)."""
    K, _, Cin, Cout = w_hwio.shape
    # Flip-fold identity requires stride 1 and symmetric padding (odd kernel).
    assert K % 2 == 1, "roto_conv flip-fold requires an odd kernel (symmetric pad)"
    pad = (K - 1) // 2
    Wp = W + 2 * pad
    WC = W * Cout
    Kc = K * Wp * Cin                          # contraction depth after kh-concat
    Kp = ((Kc + 127) // 128) * 128             # pad contraction to lane multiple

    # Precomputed once: banded + flip-folded weights, kh stacked on the
    # contraction axis, zero-padded rows, bf16 for the MXU.
    wbig = _banded_flip_weights(w_hwio.astype(jnp.float32), W)       # (K, Wp*Cin, 4*WC)
    w2d = wbig.reshape(Kc, 4 * WC)
    w2d = jnp.pad(w2d, ((0, Kp - Kc), (0, 0))).astype(compute_dtype) # (Kp, 4*WC)
    bbig = jnp.tile(b.astype(jnp.float32), W).reshape(1, WC)         # (1, WC)

    def forward(x_nchw):
        """roto_conv forward: equi_flatten(conv1(roto_patch(x))). NCHW in/out."""
        B = x_nchw.shape[0]

        # Pick Bt (images per grid step): largest divisor of B keeping
        # M = Bt*H <= 256 (one MXU stationary pass on v6e/v7x).
        Bt = 1
        for cand in range(1, B + 1):
            if B % cand == 0 and cand * H <= 256:
                Bt = cand
        Mt = Bt * H

        # TODO(synk): in a full model keep activations NHWC and consume the
        # (B*H, W*Cout) slab directly to avoid these layout transposes.
        x_nhwc = jnp.transpose(x_nchw, (0, 2, 3, 1))
        xp = jnp.pad(x_nhwc, ((0, 0), (pad, pad), (pad, pad), (0, 0)))
        xp = xp.reshape(B, H + 2 * pad, Wp * Cin)
        # Host-side im2col along kh: lane-concat the 3 row-shifted views.
        xcol = jnp.concatenate([xp[:, kh:kh + H, :] for kh in range(K)],
                               axis=-1)                               # (B, H, Kc)
        xcol = jnp.pad(xcol, ((0, 0), (0, 0), (0, Kp - Kc)))
        xcol = xcol.reshape(B * H, Kp).astype(compute_dtype)          # (B*H, Kp)

        out = pl.pallas_call(
            _roto_conv_kernel,
            out_shape=jax.ShapeDtypeStruct((B * H, WC), jnp.float32),
            grid=(B // Bt,),
            in_specs=[
                pl.BlockSpec((Mt, Kp), lambda n: (n, 0)),
                pl.BlockSpec((Kp, 4 * WC), lambda n: (0, 0)),
                pl.BlockSpec((1, WC), lambda n: (0, 0)),
            ],
            out_specs=pl.BlockSpec((Mt, WC), lambda n: (n, 0)),
            compiler_params=pltpu.CompilerParams(
                dimension_semantics=("parallel",)),
        )(xcol, w2d, bbig)                                            # (B*H, WC)

        return jnp.transpose(out.reshape(B, H, W, Cout), (0, 3, 1, 2))   # NCHW

    return forward


# ----------------------------- pure-JAX reference ---------------------------

def _roto_patch_ref(x_nchw):
    return jnp.stack(
        [x_nchw,
         jnp.flip(x_nchw, axis=-1),
         jnp.flip(x_nchw, axis=(-2, -1)),
         jnp.flip(x_nchw, axis=-2)], axis=0)


def reference_forward(x_nchw, w_hwio, b):
    B = x_nchw.shape[0]
    xr = _roto_patch_ref(x_nchw).reshape(4 * B, *x_nchw.shape[1:])
    y = jax.lax.conv_general_dilated(
        xr, w_hwio, window_strides=(1, 1), padding=((1, 1), (1, 1)),
        dimension_numbers=("NCHW", "HWIO", "NCHW"),
    ) + b[None, :, None, None]
    y = y.reshape(4, B, *y.shape[1:])
    y = jnp.stack(
        [y[0], jnp.flip(y[1], -1), jnp.flip(y[2], (-2, -1)), jnp.flip(y[3], -2)], 0)
    return jnp.max(y, axis=0)


if __name__ == "__main__":
    key = jax.random.PRNGKey(0)
    kx, kw, kb = jax.random.split(key, 3)

    B, Cin, H, W = 2, 4, 16, 16
    Cout, K = 8, 3

    x = jax.random.normal(kx, (B, Cin, H, W), jnp.float32)

    # deterministic conv parameters (uniform in +-1/sqrt(fan_in), like nn.Conv2d)
    fan_in = Cin * K * K
    bound = 1.0 / (fan_in ** 0.5)
    w = jax.random.uniform(kw, (K, K, Cin, Cout), jnp.float32, -bound, bound)  # HWIO
    b = jax.random.uniform(kb, (Cout,), jnp.float32, -bound, bound)

    roto_fwd = make_roto_conv(w, b, H=H, W=W)        # weights prepared once
    out = jax.jit(roto_fwd)(x)
    jax.block_until_ready(out)

    ref = reference_forward(x, w, b)
    assert out.shape == (B, Cout, H, W), out.shape
    # bf16 matmul operands vs f32 reference -> loosened tolerance.
    assert jnp.allclose(out, ref, atol=2e-2, rtol=2e-2), \
        float(jnp.max(jnp.abs(out - ref)))

    print("KERNEL_OK")
</pallas_src>

<mosaic_0001>
module attributes {stable_mosaic.version = 11 : i64} {
  func.func @_roto_conv_kernel(%arg0: i32, %arg1: memref<32x256xbf16, #tpu.memory_space<vmem>>, %arg2: memref<256x512xbf16, #tpu.memory_space<vmem>>, %arg3: memref<1x128xf32, #tpu.memory_space<vmem>>, %arg4: memref<32x128xf32, #tpu.memory_space<vmem>>) attributes {dimension_semantics = [#tpu.dimension_semantics<parallel>], iteration_bounds = array<i64: 1>, scalar_prefetch = 0 : i64, scratch_operands = 0 : i64, tpu.core_type = #tpu.core_type<tc>, window_params = [{transform_indices = @transform_0, window_bounds = array<i64: 32, 256>}, {pipeline_mode = #tpu.pipeline_mode<synchronous>, transform_indices = @transform_1, window_bounds = array<i64: 256, 512>}, {pipeline_mode = #tpu.pipeline_mode<synchronous>, transform_indices = @transform_2, window_bounds = array<i64: 1, 128>}, {transform_indices = @transform_3, window_bounds = array<i64: 32, 128>}]} {
    %c0 = arith.constant 0 : index
    %c0_0 = arith.constant 0 : index
    %0 = vector.load %arg1[%c0, %c0_0] : memref<32x256xbf16, #tpu.memory_space<vmem>>, vector<32x256xbf16>
    %c0_1 = arith.constant 0 : index
    %c0_2 = arith.constant 0 : index
    %1 = vector.load %arg2[%c0_1, %c0_2] : memref<256x512xbf16, #tpu.memory_space<vmem>>, vector<256x512xbf16>
    %cst = arith.constant dense<0.000000e+00> : vector<32x512xf32>
    %2 = tpu.matmul %0, %1, %cst {dimension_numbers = #tpu.dot_dimension_numbers<[1], [0], [0], [1], [0, 0, 1, 1], [], []>} : vector<32x256xbf16>, vector<256x512xbf16>, vector<32x512xf32> -> vector<32x512xf32>
    %3 = vector.extract_strided_slice %2 {offsets = [0, 0], sizes = [32, 128], strides = [1, 1]} : vector<32x512xf32> to vector<32x128xf32>
    %4 = vector.extract_strided_slice %2 {offsets = [0, 128], sizes = [32, 128], strides = [1, 1]} : vector<32x512xf32> to vector<32x128xf32>
    %5 = arith.maximumf %3, %4 : vector<32x128xf32>
    %6 = vector.extract_strided_slice %2 {offsets = [0, 256], sizes = [32, 128], strides = [1, 1]} : vector<32x512xf32> to vector<32x128xf32>
    %7 = vector.extract_strided_slice %2 {offsets = [0, 384], sizes = [32, 128], strides = [1, 1]} : vector<32x512xf32> to vector<32x128xf32>
    %8 = arith.maximumf %6, %7 : vector<32x128xf32>
    %9 = arith.maximumf %5, %8 : vector<32x128xf32>
    %c0_3 = arith.constant 0 : index
    %c0_4 = arith.constant 0 : index
    %10 = vector.load %arg3[%c0_3, %c0_4] : memref<1x128xf32, #tpu.memory_space<vmem>>, vector<1x128xf32>
    %11 = vector.broadcast %10 : vector<1x128xf32> to vector<32x128xf32>
    %12 = arith.addf %9, %11 : vector<32x128xf32>
    %c0_5 = arith.constant 0 : index
    %c0_6 = arith.constant 0 : index
    %13 = vector.load %arg4[%c0_5, %c0_6] : memref<32x128xf32, #tpu.memory_space<vmem>>, vector<32x128xf32>
    tpu.vector_store %arg4[%c0_5, %c0_6], %12 {strides = array<i32>} : memref<32x128xf32, #tpu.memory_space<vmem>>, vector<32x128xf32>,
    return
  }
  func.func @transform_0(%arg0: i32) -> (i32, i32) {
    %c0_i32 = arith.constant 0 : i32
    %c0_i32_0 = arith.constant 0 : i32
    return %arg0, %c0_i32 : i32, i32
  }
  func.func @transform_1(%arg0: i32) -> (i32, i32) {
    %c0_i32 = arith.constant 0 : i32
    %c0_i32_0 = arith.constant 0 : i32
    %c0_i32_1 = arith.constant 0 : i32
    return %c0_i32, %c0_i32_0 : i32, i32
  }
  func.func @transform_2(%arg0: i32) -> (i32, i32) {
    %c0_i32 = arith.constant 0 : i32
    %c0_i32_0 = arith.constant 0 : i32
    %c0_i32_1 = arith.constant 0 : i32
    return %c0_i32, %c0_i32_0 : i32, i32
  }
  func.func @transform_3(%arg0: i32) -> (i32, i32) {
    %c0_i32 = arith.constant 0 : i32
    %c0_i32_0 = arith.constant 0 : i32
    return %arg0, %c0_i32 : i32, i32
  }
}

</mosaic_0001>

<llo_original>
// kernel: forward.1
$region0: #{forward.1}
  #allocation0 [shape = 'u32[]', space=smem, size = 0x4, offset = 0x4, fixed_abs, tag = 'smem constant byte address 0x4 - core index']
  #allocation1 [shape = 'u32[144,128]{1,0:T(1,128)}', space=vmem, size = 0x12000, scoped, tag = 'internal scratch']
  %s0 = inlined_call_operand.vmem [shape: bf16[32,256], index: 0, kind: input, shape index: {}]
  %s1 = inlined_call_operand.vmem [shape: bf16[256,512], index: 1, kind: input, shape index: {}]
  %s2 = inlined_call_operand.vmem [shape: f32[1,128], index: 2, kind: input, shape index: {}]
  %s3 = inlined_call_operand.vmem [shape: f32[32,128], index: 3, kind: output, shape index: {}]
  %s4 = sld [smem:[#allocation0]]
  $region22: #{forward.1} parent=0
    _
  %s6 = ssub.s32 1, %s4
  %s7 = scalar_select 0, %s6, %s4
  // Predicated region
  $region2: #{forward.1} parent=0 // pred_check
    _
  $region3: #{forward.1} parent=0 // pred_check_branch
    %9 = sbr.rel (0) target = $region5
  $region4: #{forward.1} parent=0 // pred_region
    _
  $region5: #{forward.1} parent=0 // pred_fallthru
    _
  // Predicated region
  $region6: #{forward.1} parent=0 // pred_check
    _
  $region7: #{forward.1} parent=0 // pred_check_branch
    %11 = sbr.rel (0) target = $region9
  $region8: #{forward.1} parent=0 // pred_region
    _
  $region9: #{forward.1} parent=0 // pred_fallthru
    _
  // Predicated region
  $region10: #{forward.1} parent=0 // pred_check
    _
  $region11: #{forward.1} parent=0 // pred_check_branch
    %13 = sbr.rel (0) target = $region13
  $region12: #{forward.1} parent=0 // pred_region
    _
  $region13: #{forward.1} parent=0 // pred_fallthru
    _
  %v14 = vld [vmem:[%s0] sm:$0xff]
  %v15 = vld [vmem:[%s0 + $0x8] sm:$0xff]
  %v16 = vld [vmem:[%s0 + $0x10] sm:$0xff]
  %v17 = vld [vmem:[%s0 + $0x18] sm:$0xff]
  %v18 = vld [vmem:[%s1] sm:$0xff]
  %v19 = vld [vmem:[%s1 + $0x8] sm:$0xff]
  %v20 = vld [vmem:[%s1 + $0x10] sm:$0xff]
  %v21 = vld [vmem:[%s1 + $0x18] sm:$0xff]
  %v22 = vld [vmem:[%s1 + $0x20] sm:$0xff]
  %v23 = vld [vmem:[%s1 + $0x28] sm:$0xff]
  %v24 = vld [vmem:[%s1 + $0x30] sm:$0xff]
  %v25 = vld [vmem:[%s1 + $0x38] sm:$0xff]
  %v26 = vld [vmem:[%s1 + $0x40] sm:$0xff]
  %v27 = vld [vmem:[%s1 + $0x48] sm:$0xff]
  %v28 = vld [vmem:[%s1 + $0x50] sm:$0xff]
  %v29 = vld [vmem:[%s1 + $0x58] sm:$0xff]
  %v30 = vld [vmem:[%s1 + $0x60] sm:$0xff]
  %v31 = vld [vmem:[%s1 + $0x68] sm:$0xff]
  %v32 = vld [vmem:[%s1 + $0x70] sm:$0xff]
  %v33 = vld [vmem:[%s1 + $0x78] sm:$0xff]
  %v34 = vld [vmem:[%s1 + $0x80] sm:$0xff]
  %v35 = vld [vmem:[%s1 + $0x88] sm:$0xff]
  %v36 = vld [vmem:[%s1 + $0x90] sm:$0xff]
  %v37 = vld [vmem:[%s1 + $0x98] sm:$0xff]
  %v38 = vld [vmem:[%s1 + $0xa0] sm:$0xff]
  %v39 = vld [vmem:[%s1 + $0xa8] sm:$0xff]
  %v40 = vld [vmem:[%s1 + $0xb0] sm:$0xff]
  %v41 = vld [vmem:[%s1 + $0xb8] sm:$0xff]
  %v42 = vld [vmem:[%s1 + $0xc0] sm:$0xff]
  %v43 = vld [vmem:[%s1 + $0xc8] sm:$0xff]
  %v44 = vld [vmem:[%s1 + $0xd0] sm:$0xff]
  %v45 = vld [vmem:[%s1 + $0xd8] sm:$0xff]
  %v46 = vld [vmem:[%s1 + $0xe0] sm:$0xff]
  %v47 = vld [vmem:[%s1 + $0xe8] sm:$0xff]
  %v48 = vld [vmem:[%s1 + $0xf0] sm:$0xff]
  %v49 = vld [vmem:[%s1 + $0xf8] sm:$0xff]
  %v50 = vld [vmem:[%s1 + $0x100] sm:$0xff]
  %v51 = vld [vmem:[%s1 + $0x108] sm:$0xff]
  %v52 = vld [vmem:[%s1 + $0x110] sm:$0xff]
  %v53 = vld [vmem:[%s1 + $0x118] sm:$0xff]
  %v54 = vld [vmem:[%s1 + $0x120] sm:$0xff]
  %v55 = vld [vmem:[%s1 + $0x128] sm:$0xff]
  %v56 = vld [vmem:[%s1 + $0x130] sm:$0xff]
  %v57 = vld [vmem:[%s1 + $0x138] sm:$0xff]
  %v58 = vld [vmem:[%s1 + $0x140] sm:$0xff]
  %v59 = vld [vmem:[%s1 + $0x148] sm:$0xff]
  %v60 = vld [vmem:[%s1 + $0x150] sm:$0xff]
  %v61 = vld [vmem:[%s1 + $0x158] sm:$0xff]
  %v62 = vld [vmem:[%s1 + $0x160] sm:$0xff]
  %v63 = vld [vmem:[%s1 + $0x168] sm:$0xff]
  %v64 = vld [vmem:[%s1 + $0x170] sm:$0xff]
  %v65 = vld [vmem:[%s1 + $0x178] sm:$0xff]
  %v66 = vld [vmem:[%s1 + $0x180] sm:$0xff]
  %v67 = vld [vmem:[%s1 + $0x188] sm:$0xff]
  %v68 = vld [vmem:[%s1 + $0x190] sm:$0xff]
  %v69 = vld [vmem:[%s1 + $0x198] sm:$0xff]
  %v70 = vld [vmem:[%s1 + $0x1a0] sm:$0xff]
  %v71 = vld [vmem:[%s1 + $0x1a8] sm:$0xff]
  %v72 = vld [vmem:[%s1 + $0x1b0] sm:$0xff]
  %v73 = vld [vmem:[%s1 + $0x1b8] sm:$0xff]
  %v74 = vld [vmem:[%s1 + $0x1c0] sm:$0xff]
  %v75 = vld [vmem:[%s1 + $0x1c8] sm:$0xff]
  %v76 = vld [vmem:[%s1 + $0x1d0] sm:$0xff]
  %v77 = vld [vmem:[%s1 + $0x1d8] sm:$0xff]
  %v78 = vld [vmem:[%s1 + $0x1e0] sm:$0xff]
  %v79 = vld [vmem:[%s1 + $0x1e8] sm:$0xff]
  %v80 = vld [vmem:[%s1 + $0x1f0] sm:$0xff]
  %v81 = vld [vmem:[%s1 + $0x1f8] sm:$0xff]
  %v86 = vunpack.c.l.b16 %v14
  %v87 = vunpack.c.h.b16 %v14
  %v88 = vunpack.c.l.b16 %v15
  %v89 = vunpack.c.h.b16 %v15
  %v90 = vunpack.c.l.b16 %v16
  %v91 = vunpack.c.h.b16 %v16
  %v92 = vunpack.c.l.b16 %v17
  %v93 = vunpack.c.h.b16 %v17
  %v94 = vpack.c.b16 %v88, %v86
  %v95 = vpack.c.b16 %v89, %v87
  %v96 = vpack.c.b16 %v92, %v90
  %v97 = vpack.c.b16 %v93, %v91
  %v166 = vunpack.c.l.b16 %v18
  %v167 = vunpack.c.h.b16 %v18
  %v168 = vunpack.c.l.b16 %v19
  %v169 = vunpack.c.h.b16 %v19
  %v170 = vunpack.c.l.b16 %v20
  %v171 = vunpack.c.h.b16 %v20
  %v172 = vunpack.c.l.b16 %v21
  %v173 = vunpack.c.h.b16 %v21
  %v174 = vunpack.c.l.b16 %v22
  %v175 = vunpack.c.h.b16 %v22
  %v176 = vunpack.c.l.b16 %v23
  %v177 = vunpack.c.h.b16 %v23
  %v178 = vunpack.c.l.b16 %v24
  %v179 = vunpack.c.h.b16 %v24
  %v180 = vunpack.c.l.b16 %v25
  %v181 = vunpack.c.h.b16 %v25
  %v182 = vunpack.c.l.b16 %v26
  %v183 = vunpack.c.h.b16 %v26
  %v184 = vunpack.c.l.b16 %v27
  %v185 = vunpack.c.h.b16 %v27
  %v186 = vunpack.c.l.b16 %v28
  %v187 = vunpack.c.h.b16 %v28
  %v188 = vunpack.c.l.b16 %v29
  %v189 = vunpack.c.h.b16 %v29
  %v190 = vunpack.c.l.b16 %v30
  %v191 = vunpack.c.h.b16 %v30
  %v192 = vunpack.c.l.b16 %v31
  %v193 = vunpack.c.h.b16 %v31
  %v194 = vunpack.c.l.b16 %v32
  %v195 = vunpack.c.h.b16 %v32
  %v196 = vunpack.c.l.b16 %v33
  %v197 = vunpack.c.h.b16 %v33
  %v198 = vunpack.c.l.b16 %v34
  %v199 = vunpack.c.h.b16 %v34
  %v200 = vunpack.c.l.b16 %v35
  %v201 = vunpack.c.h.b16 %v35
  %v202 = vunpack.c.l.b16 %v36
  %v203 = vunpack.c.h.b16 %v36
  %v204 = vunpack.c.l.b16 %v37
  %v205 = vunpack.c.h.b16 %v37
  %v206 = vunpack.c.l.b16 %v38
  %v207 = vunpack.c.h.b16 %v38
  %v208 = vunpack.c.l.b16 %v39
  %v209 = vunpack.c.h.b16 %v39
  %v210 = vunpack.c.l.b16 %v40
  %v211 = vunpack.c.h.b16 %v40
  %v212 = vunpack.c.l.b16 %v41
  %v213 = vunpack.c.h.b16 %v41
  %v214 = vunpack.c.l.b16 %v42
  %v215 = vunpack.c.h.b16 %v42
  %v216 = vunpack.c.l.b16 %v43
  %v217 = vunpack.c.h.b16 %v43
  %v218 = vunpack.c.l.b16 %v44
  %v219 = vunpack.c.h.b16 %v44
  %v220 = vunpack.c.l.b16 %v45
  %v221 = vunpack.c.h.b16 %v45
  %v222 = vunpack.c.l.b16 %v46
  %v223 = vunpack.c.h.b16 %v46
  %v224 = vunpack.c.l.b16 %v47
  %v225 = vunpack.c.h.b16 %v47
  %v226 = vunpack.c.l.b16 %v48
  %v227 = vunpack.c.h.b16 %v48
  %v228 = vunpack.c.l.b16 %v49
  %v229 = vunpack.c.h.b16 %v49
  %v230 = vunpack.c.l.b16 %v50
  %v231 = vunpack.c.h.b16 %v50
  %v232 = vunpack.c.l.b16 %v51
  %v233 = vunpack.c.h.b16 %v51
  %v234 = vunpack.c.l.b16 %v52
  %v235 = vunpack.c.h.b16 %v52
  %v236 = vunpack.c.l.b16 %v53
  %v237 = vunpack.c.h.b16 %v53
  %v238 = vunpack.c.l.b16 %v54
  %v239 = vunpack.c.h.b16 %v54
  %v240 = vunpack.c.l.b16 %v55
  %v241 = vunpack.c.h.b16 %v55
  %v242 = vunpack.c.l.b16 %v56
  %v243 = vunpack.c.h.b16 %v56
  %v244 = vunpack.c.l.b16 %v57
  %v245 = vunpack.c.h.b16 %v57
  %v246 = vunpack.c.l.b16 %v58
  %v247 = vunpack.c.h.b16 %v58
  %v248 = vunpack.c.l.b16 %v59
  %v249 = vunpack.c.h.b16 %v59
  %v250 = vunpack.c.l.b16 %v60
  %v251 = vunpack.c.h.b16 %v60
  %v252 = vunpack.c.l.b16 %v61
  %v253 = vunpack.c.h.b16 %v61
  %v254 = vunpack.c.l.b16 %v62
  %v255 = vunpack.c.h.b16 %v62
  %v256 = vunpack.c.l.b16 %v63
  %v257 = vunpack.c.h.b16 %v63
  %v258 = vunpack.c.l.b16 %v64
  %v259 = vunpack.c.h.b16 %v64
  %v260 = vunpack.c.l.b16 %v65
  %v261 = vunpack.c.h.b16 %v65
  %v262 = vunpack.c.l.b16 %v66
  %v263 = vunpack.c.h.b16 %v66
  %v264 = vunpack.c.l.b16 %v67
  %v265 = vunpack.c.h.b16 %v67
  %v266 = vunpack.c.l.b16 %v68
  %v267 = vunpack.c.h.b16 %v68
  %v268 = vunpack.c.l.b16 %v69
  %v269 = vunpack.c.h.b16 %v69
  %v270 = vunpack.c.l.b16 %v70
  %v271 = vunpack.c.h.b16 %v70
  %v272 = vunpack.c.l.b16 %v71
  %v273 = vunpack.c.h.b16 %v71
  %v274 = vunpack.c.l.b16 %v72
  %v275 = vunpack.c.h.b16 %v72
  %v276 = vunpack.c.l.b16 %v73
  %v277 = vunpack.c.h.b16 %v73
  %v278 = vunpack.c.l.b16 %v74
  %v279 = vunpack.c.h.b16 %v74
  %v280 = vunpack.c.l.b16 %v75
  %v281 = vunpack.c.h.b16 %v75
  %v282 = vunpack.c.l.b16 %v76
  %v283 = vunpack.c.h.b16 %v76
  %v284 = vunpack.c.l.b16 %v77
  %v285 = vunpack.c.h.b16 %v77
  %v286 = vunpack.c.l.b16 %v78
  %v287 = vunpack.c.h.b16 %v78
  %v288 = vunpack.c.l.b16 %v79
  %v289 = vunpack.c.h.b16 %v79
  %v290 = vunpack.c.l.b16 %v80
  %v291 = vunpack.c.h.b16 %v80
  %v292 = vunpack.c.l.b16 %v81
  %v293 = vunpack.c.h.b16 %v81
  %v294 = vpack.c.b16 %v170, %v166
  %v295 = vpack.c.b16 %v171, %v167
  %v296 = vpack.c.b16 %v172, %v168
  %v297 = vpack.c.b16 %v173, %v169
  %v298 = vpack.c.b16 %v178, %v174
  %v299 = vpack.c.b16 %v179, %v175
  %v300 = vpack.c.b16 %v180, %v176
  %v301 = vpack.c.b16 %v181, %v177
  %v302 = vpack.c.b16 %v186, %v182
  %v303 = vpack.c.b16 %v187, %v183
  %v304 = vpack.c.b16 %v188, %v184
  %v305 = vpack.c.b16 %v189, %v185
  %v306 = vpack.c.b16 %v194, %v190
  %v307 = vpack.c.b16 %v195, %v191
  %v308 = vpack.c.b16 %v196, %v192
  %v309 = vpack.c.b16 %v197, %v193
  %v310 = vpack.c.b16 %v202, %v198
  %v311 = vpack.c.b16 %v203, %v199
  %v312 = vpack.c.b16 %v204, %v200
  %v313 = vpack.c.b16 %v205, %v201
  %v314 = vpack.c.b16 %v210, %v206
  %v315 = vpack.c.b16 %v211, %v207
  %v316 = vpack.c.b16 %v212, %v208
  %v317 = vpack.c.b16 %v213, %v209
  %v318 = vpack.c.b16 %v218, %v214
  %v319 = vpack.c.b16 %v219, %v215
  %v320 = vpack.c.b16 %v220, %v216
  %v321 = vpack.c.b16 %v221, %v217
  %v322 = vpack.c.b16 %v226, %v222
  %v323 = vpack.c.b16 %v227, %v223
  %v324 = vpack.c.b16 %v228, %v224
  %v325 = vpack.c.b16 %v229, %v225
  %v326 = vpack.c.b16 %v234, %v230
  %v327 = vpack.c.b16 %v235, %v231
  %v328 = vpack.c.b16 %v236, %v232
  %v329 = vpack.c.b16 %v237, %v233
  %v330 = vpack.c.b16 %v242, %v238
  %v331 = vpack.c.b16 %v243, %v239
  %v332 = vpack.c.b16 %v244, %v240
  %v333 = vpack.c.b16 %v245, %v241
  %v334 = vpack.c.b16 %v250, %v246
  %v335 = vpack.c.b16 %v251, %v247
  %v336 = vpack.c.b16 %v252, %v248
  %v337 = vpack.c.b16 %v253, %v249
  %v338 = vpack.c.b16 %v258, %v254
  %v339 = vpack.c.b16 %v259, %v255
  %v340 = vpack.c.b16 %v260, %v256
  %v341 = vpack.c.b16 %v261, %v257
  %v342 = vpack.c.b16 %v266, %v262
  %v343 = vpack.c.b16 %v267, %v263
  %v344 = vpack.c.b16 %v268, %v264
  %v345 = vpack.c.b16 %v269, %v265
  %v346 = vpack.c.b16 %v274, %v270
  %v347 = vpack.c.b16 %v275, %v271
  %v348 = vpack.c.b16 %v276, %v272
  %v349 = vpack.c.b16 %v277, %v273
  %v350 = vpack.c.b16 %v282, %v278
  %v351 = vpack.c.b16 %v283, %v279
  %v352 = vpack.c.b16 %v284, %v280
  %v353 = vpack.c.b16 %v285, %v281
  %v354 = vpack.c.b16 %v290, %v286
  %v355 = vpack.c.b16 %v291, %v287
  %v356 = vpack.c.b16 %v292, %v288
  %v357 = vpack.c.b16 %v293, %v289
  %422 = vmatprep.subr.bf16.mxu0 %v323
  %423 = vmatpush1.bf16.msra.mxu0 %v322
  %424 = vmatprep.subr.bf16.mxu0 %v319
  %425 = vmatpush1.bf16.msra.mxu0 %v318
  %426 = vmatprep.subr.bf16.mxu0 %v315
  %427 = vmatpush1.bf16.msra.mxu0 %v314
  %428 = vmatprep.subr.bf16.mxu0 %v311
  %429 = vmatpush1.bf16.msra.mxu0 %v310
  %430 = vmatprep.subr.bf16.mxu0 %v307
  %431 = vmatpush1.bf16.msra.mxu0 %v306
  %432 = vmatprep.subr.bf16.mxu0 %v303
  %433 = vmatpush1.bf16.msra.mxu0 %v302
  %434 = vmatprep.subr.bf16.mxu0 %v299
  %435 = vmatpush1.bf16.msra.mxu0 %v298
  %436 = vmatprep.subr.bf16.mxu0 %v295
  %437 = vmatpush1.bf16.msra.mxu0 %v294
  %438 = vmatprep.subr.bf16.mxu0 %v355
  %439 = vmatpush2.bf16.msra.mxu0 %v354
  %440 = vmatprep.subr.bf16.mxu0 %v351
  %441 = vmatpush2.bf16.msra.mxu0 %v350
  %442 = vmatprep.subr.bf16.mxu0 %v347
  %443 = vmatpush2.bf16.msra.mxu0 %v346
  %444 = vmatprep.subr.bf16.mxu0 %v343
  %445 = vmatpush2.bf16.msra.mxu0 %v342
  %446 = vmatprep.subr.bf16.mxu0 %v339
  %447 = vmatpush2.bf16.msra.mxu0 %v338
  %448 = vmatprep.subr.bf16.mxu0 %v335
  %449 = vmatpush2.bf16.msra.mxu0 %v334
  %450 = vmatprep.subr.bf16.mxu0 %v331
  %451 = vmatpush2.bf16.msra.mxu0 %v330
  %452 = vmatprep.subr.bf16.mxu0 %v327
  %453 = vmatpush2.bf16.msra.mxu0 %v326
  %454 = vmatprep.mubr.bf16.mxu0 %v95
  %455 = vmatmul.mubr.bf16.gmra.mxu0 %v94
  %v456 = vpop.f32.mrf.mxu0
  %v457 = vadd.f32 0.0, %v456
  %v458 = vpop.f32.mrf.mxu0
  %v459 = vadd.f32 0.0, %v458
  %v460 = vpop.f32.mrf.mxu0
  %v461 = vadd.f32 0.0, %v460
  %v462 = vpop.f32.mrf.mxu0
  %v463 = vadd.f32 0.0, %v462
  %464 = vmatprep.mubr.bf16.mxu0 %v97
  %465 = vmatmul.mubr.bf16.gmra.mxu0 %v96
  %v466 = vpop.f32.mrf.mxu0
  %v467 = vadd.f32 0.0, %v466
  %v468 = vpop.f32.mrf.mxu0
  %v469 = vadd.f32 0.0, %v468
  %v470 = vpop.f32.mrf.mxu0
  %v471 = vadd.f32 0.0, %v470
  %v472 = vpop.f32.mrf.mxu0
  %v473 = vadd.f32 0.0, %v472
  %474 = vdwg.mxu0
  %475 = vmatprep.subr.bf16.mxu0 %v325
  %476 = vmatpush1.bf16.msra.mxu0 %v324
  %477 = vmatprep.subr.bf16.mxu0 %v321
  %478 = vmatpush1.bf16.msra.mxu0 %v320
  %479 = vmatprep.subr.bf16.mxu0 %v317
  %480 = vmatpush1.bf16.msra.mxu0 %v316
  %481 = vmatprep.subr.bf16.mxu0 %v313
  %482 = vmatpush1.bf16.msra.mxu0 %v312
  %483 = vmatprep.subr.bf16.mxu0 %v309
  %484 = vmatpush1.bf16.msra.mxu0 %v308
  %485 = vmatprep.subr.bf16.mxu0 %v305
  %486 = vmatpush1.bf16.msra.mxu0 %v304
  %487 = vmatprep.subr.bf16.mxu0 %v301
  %488 = vmatpush1.bf16.msra.mxu0 %v300
  %489 = vmatprep.subr.bf16.mxu0 %v297
  %490 = vmatpush1.bf16.msra.mxu0 %v296
  %491 = vmatprep.subr.bf16.mxu0 %v357
  %492 = vmatpush2.bf16.msra.mxu0 %v356
  %493 = vmatprep.subr.bf16.mxu0 %v353
  %494 = vmatpush2.bf16.msra.mxu0 %v352
  %495 = vmatprep.subr.bf16.mxu0 %v349
  %496 = vmatpush2.bf16.msra.mxu0 %v348
  %497 = vmatprep.subr.bf16.mxu0 %v345
  %498 = vmatpush2.bf16.msra.mxu0 %v344
  %499 = vmatprep.subr.bf16.mxu0 %v341
  %500 = vmatpush2.bf16.msra.mxu0 %v340
  %501 = vmatprep.subr.bf16.mxu0 %v337
  %502 = vmatpush2.bf16.msra.mxu0 %v336
  %503 = vmatprep.subr.bf16.mxu0 %v333
  %504 = vmatpush2.bf16.msra.mxu0 %v332
  %505 = vmatprep.subr.bf16.mxu0 %v329
  %506 = vmatpush2.bf16.msra.mxu0 %v328
  %507 = vmatprep.mubr.bf16.mxu0 %v95
  %508 = vmatmul.mubr.bf16.gmra.mxu0 %v94
  %v509 = vpop.f32.mrf.mxu0
  %v510 = vadd.f32 0.0, %v509
  %v511 = vpop.f32.mrf.mxu0
  %v512 = vadd.f32 0.0, %v511
  %v513 = vpop.f32.mrf.mxu0
  %v514 = vadd.f32 0.0, %v513
  %v515 = vpop.f32.mrf.mxu0
  %v516 = vadd.f32 0.0, %v515
  %517 = vmatprep.mubr.bf16.mxu0 %v97
  %518 = vmatmul.mubr.bf16.gmra.mxu0 %v96
  %v519 = vpop.f32.mrf.mxu0
  %v520 = vadd.f32 0.0, %v519
  %v521 = vpop.f32.mrf.mxu0
  %v522 = vadd.f32 0.0, %v521
  %v523 = vpop.f32.mrf.mxu0
  %v524 = vadd.f32 0.0, %v523
  %v525 = vpop.f32.mrf.mxu0
  %v526 = vadd.f32 0.0, %v525
  %527 = vdwg.mxu0
  %v528 = vmax.f32 %v457, %v459
  %v529 = vmax.f32 %v461, %v463
  %v530 = vmax.f32 %v467, %v469
  %v531 = vmax.f32 %v471, %v473
  %v532 = vmax.f32 %v510, %v512
  %v533 = vmax.f32 %v514, %v516
  %v534 = vmax.f32 %v520, %v522
  %v535 = vmax.f32 %v524, %v526
  %v536 = vmax.f32 %v528, %v532
  %v537 = vmax.f32 %v529, %v533
  %v538 = vmax.f32 %v530, %v534
  %v539 = vmax.f32 %v531, %v535
  %v540 = vld [vmem:[%s2] sm:$0x1]
  %v542 = vlaneseq
  %v543 = vshrl.u32 %v542, 7
  %v544 = vsub.s32 0, %v543
  %v545 = vrot.slane %v540, %v544
  %v547 = vadd.f32 %v536, %v545
  %v548 = vadd.f32 %v537, %v545
  %v549 = vadd.f32 %v538, %v545
  %v550 = vadd.f32 %v539, %v545
  %551 = vst [vmem:[%s3] sm:$0xff] %v547
  %552 = vst [vmem:[%s3 + $0x8] sm:$0xff] %v548
  %553 = vst [vmem:[%s3 + $0x10] sm:$0xff] %v549
  %554 = vst [vmem:[%s3 + $0x18] sm:$0xff] %v550
  // Predicated region
  $region14: #{forward.1} parent=0 // pred_check
    _
  $region15: #{forward.1} parent=0 // pred_check_branch
    %556 = sbr.rel (0) target = $region17
  $region16: #{forward.1} parent=0 // pred_region
    _
  $region17: #{forward.1} parent=0 // pred_fallthru
    _
  // Predicated region
  $region18: #{forward.1} parent=0 // pred_check
    _
  $region19: #{forward.1} parent=0 // pred_check_branch
    %558 = sbr.rel (0) target = $region21
  $region20: #{forward.1} parent=0 // pred_region
    _
  $region21: #{forward.1} parent=0 // pred_fallthru
    _

</llo_original>
